<compile_context>
chip_gen: v7x
topology: tpu7x:2x2x1
jax: 0.10.0
libtpu: 0.0.40
codegen_flags: <defaults>
</compile_context>

<pallas_src>
import jax
import jax.numpy as jnp
from jax.experimental import pallas as pl
from jax.experimental.pallas import tpu as pltpu

# ---------------- config (mirrors the PyTorch config object) ----------------
VOCAB = 50      # input_size
NHID = 32       # config.nhid
EMSIZE = 32     # config.emsize (must equal nhid for the module's forward to be consistent)
IMGSIZE = 64    # config.imgsize
NLAYERS = 1     # config.nlayers
SEQ = 8         # encoder_outputs sequence length
BATCH = 2
# config.dropout = 0.0 -> self.drop is identity; config.model = 'GRU'

EMB_ROWS = ((VOCAB + 7) // 8) * 8          # vocab rows padded to a sublane multiple (56)
OUT_LANES = 128                            # packed output slab width (one lane tile)
assert VOCAB + NHID + SEQ <= OUT_LANES


def _decoder_kernel(idx_ref, act_ref, enc_ref, emb_lin_ref, w_ref, b_ref, out_ref):
    f32 = jnp.float32
    B = act_ref.shape[0]
    H = NHID
    V = VOCAB
    S = enc_ref.shape[1]

    # ---------------- packed-parameter views (static slices) -----------------------
    emb = emb_lin_ref[0:EMB_ROWS, :]              # (56, H)  embedding table (rows >= V are zero)
    lin_w = emb_lin_ref[EMB_ROWS:, :]             # (IMGSIZE, H)

    w_i = w_ref[:, 0:3 * H]                       # (EMSIZE, 3H) fused GRU input weights  [r|z|n]
    w_h = w_ref[:, 3 * H:6 * H]                   # (H, 3H)      fused GRU hidden weights [r|z|n]
    attn_w_mat = w_ref[:, 6 * H:7 * H]            # (H, H)
    comb_w1 = w_ref[:, 7 * H:8 * H]               # (H, H)   acts on context
    comb_w2 = w_ref[:, 8 * H:9 * H]               # (H, H)   acts on h_new
    out_w = w_ref[:, 9 * H:9 * H + V]             # (H, V)

    b_i = b_ref[:, 0:3 * H]                       # (1, 3H)
    b_h = b_ref[:, 3 * H:6 * H]                   # (1, 3H)
    comb_b = b_ref[:, 6 * H:7 * H]                # (1, H)
    lin_b = b_ref[:, 7 * H:8 * H]                 # (1, H)
    out_b = b_ref[:, 8 * H:8 * H + V]             # (1, V)

    # ---------------- embedding lookup (token ids read from SMEM) ------------------
    iota_row = jax.lax.broadcasted_iota(jnp.int32, (1, EMB_ROWS), 1)        # (1, 56)
    onehot = jnp.concatenate(
        [(iota_row == idx_ref[b]).astype(f32) for b in range(B)], axis=0)   # (B, 56)
    embedded = jnp.dot(onehot, emb, preferred_element_type=f32)             # (B, H)

    # ---------------- image-feature projection + input mix -------------------------
    img = act_ref[:, 0:IMGSIZE]                   # (B, IMGSIZE)
    h0 = act_ref[:, IMGSIZE:IMGSIZE + H]          # (B, H)
    img_emb = jnp.dot(img, lin_w, preferred_element_type=f32) + lin_b       # (B, H)
    x = (embedded + img_emb) * 0.5                # (B, H)

    # ---------------- one GRU step: 2 fused matmuls, gates via lane slices ----------
    gi = jnp.dot(x, w_i, preferred_element_type=f32) + b_i                  # (B, 3H)
    gh = jnp.dot(h0, w_h, preferred_element_type=f32) + b_h                 # (B, 3H)
    r = jax.nn.sigmoid(gi[:, 0:H] + gh[:, 0:H])
    z = jax.nn.sigmoid(gi[:, H:2 * H] + gh[:, H:2 * H])
    n = jnp.tanh(gi[:, 2 * H:3 * H] + r * gh[:, 2 * H:3 * H])
    h_new = (1.0 - z) * n + z * h0                                          # (B, H)

    # ---------------- global attention (batched matmuls on the MXU) -----------------
    enc = enc_ref[...]                                                      # (B, S, H)
    hw = jnp.dot(h_new, attn_w_mat, preferred_element_type=f32)             # (B, H)
    score = jnp.einsum("bqh,bsh->bqs", hw[:, None, :], enc,
                       preferred_element_type=f32)                          # (B, 1, S)
    m = jnp.max(score, axis=-1, keepdims=True)
    e = jnp.exp(score - m)
    attn = e * pl.reciprocal(jnp.sum(e, axis=-1, keepdims=True))            # (B, 1, S)
    ctx = jnp.einsum("bqs,bsh->bqh", attn, enc,
                     preferred_element_type=f32)[:, 0, :]                   # (B, H)
    attn_w = attn[:, 0, :]                                                  # (B, S)

    # ---------------- attn_combine + output projection + log_softmax ----------------
    comb = (jnp.dot(ctx, comb_w1, preferred_element_type=f32)
            + jnp.dot(h_new, comb_w2, preferred_element_type=f32) + comb_b)  # (B, H)
    logits = jnp.dot(comb, out_w, preferred_element_type=f32) + out_b        # (B, V)
    lm = jnp.max(logits, axis=-1, keepdims=True)
    shifted = logits - lm
    lse = jnp.log(jnp.sum(jnp.exp(shifted), axis=-1, keepdims=True))
    log_probs = shifted - lse                                                # (B, V)

    # -------- single lane-dense output slab: [log_probs | h_new | attn_w | zero pad] --------
    pad = jnp.zeros((B, OUT_LANES - (V + H + S)), f32)
    out_ref[...] = jnp.concatenate([log_probs, h_new, attn_w, pad], axis=1)  # (B, 128)


def pack_params(p):
    """One-time host-side packing: 22 parameter tensors -> 3 DMA-friendly arrays."""
    f32 = jnp.float32
    emb_pad = jnp.concatenate(
        [p["emb"].astype(f32), jnp.zeros((EMB_ROWS - VOCAB, NHID), f32)], axis=0)   # (56, H)
    emb_lin = jnp.concatenate([emb_pad, p["lin_w"].T.astype(f32)], axis=0)          # (56+IMG, H)

    w_pack = jnp.concatenate([
        p["w_ir"].T, p["w_iz"].T, p["w_in"].T,          # fused GRU input weights  (EMSIZE, 3H)
        p["w_hr"].T, p["w_hz"].T, p["w_hn"].T,          # fused GRU hidden weights (H, 3H)
        p["attn_w"],                                    # (H, H)
        p["comb_w"][:, :NHID].T, p["comb_w"][:, NHID:].T,
        p["out_w"].T,                                   # (H, V)
    ], axis=1).astype(f32)                              # (H, 9H + V)

    b_pack = jnp.concatenate([
        p["b_ir"], p["b_iz"], p["b_in"],
        p["b_hr"], p["b_hz"], p["b_hn"],
        p["comb_b"], p["lin_b"], p["out_b"],
    ]).reshape(1, -1).astype(f32)                       # (1, 8H + V)

    return {"emb_lin": emb_lin, "w_pack": w_pack, "b_pack": b_pack}


@jax.jit
def globally_attentive_decoder(idx, img_features, hidden, encoder_outputs, packed):
    """idx: (B,) int32 token ids; img_features: (B, IMGSIZE); hidden: (NLAYERS, B, NHID);
    encoder_outputs: (B, S, NHID). Returns (log_probs(B,V), hidden(NLAYERS,B,NHID), attn(B,S))."""
    B = idx.shape[0]
    S = encoder_outputs.shape[1]

    # pack the per-step activations (img_features | h0) into one slab -> one DMA
    act = jnp.concatenate([img_features.astype(jnp.float32),
                           hidden[0].astype(jnp.float32)], axis=1)           # (B, IMGSIZE + H)

    vmem = pl.BlockSpec(memory_space=pltpu.MemorySpace.VMEM)
    smem = pl.BlockSpec(memory_space=pltpu.MemorySpace.SMEM)

    # TODO(synk): for autoregressive decoding, hoist the token loop into the kernel
    # (grid=(T,), constant index_maps so weights stay VMEM-resident, hidden state via
    # input_output_aliases) so weights are DMA'd once per sequence, not once per token.
    # TODO(synk): for large batches on v7x, add a leading batch grid axis with
    # dimension_semantics=("parallel",) to shard the batch across the two TensorCores.
    slab = pl.pallas_call(
        _decoder_kernel,
        out_shape=jax.ShapeDtypeStruct((B, OUT_LANES), jnp.float32),
        in_specs=[smem, vmem, vmem, vmem, vmem, vmem],
        out_specs=vmem,
    )(idx.astype(jnp.int32), act, encoder_outputs.astype(jnp.float32),
      packed["emb_lin"], packed["w_pack"], packed["b_pack"])

    log_probs = slab[:, :VOCAB]
    h_new = slab[:, VOCAB:VOCAB + NHID]
    attn_w = slab[:, VOCAB + NHID:VOCAB + NHID + S]
    return log_probs, h_new[None, :, :], attn_w


def init_params(key):
    ks = jax.random.split(key, 20)
    def nrm(k, shape, scale=0.1):
        return (scale * jax.random.normal(k, shape)).astype(jnp.float32)
    return {
        "emb": nrm(ks[0], (VOCAB, NHID), 1.0),           # nn.Embedding ~ N(0,1)
        "lin_w": nrm(ks[1], (NHID, IMGSIZE)),            # nn.Linear(imgsize, nhid)
        "lin_b": nrm(ks[2], (NHID,)),
        "w_ir": nrm(ks[3], (NHID, EMSIZE)), "w_iz": nrm(ks[4], (NHID, EMSIZE)),
        "w_in": nrm(ks[5], (NHID, EMSIZE)),
        "b_ir": nrm(ks[6], (NHID,)), "b_iz": nrm(ks[7], (NHID,)), "b_in": nrm(ks[8], (NHID,)),
        "w_hr": nrm(ks[9], (NHID, NHID)), "w_hz": nrm(ks[10], (NHID, NHID)),
        "w_hn": nrm(ks[11], (NHID, NHID)),
        "b_hr": nrm(ks[12], (NHID,)), "b_hz": nrm(ks[13], (NHID,)), "b_hn": nrm(ks[14], (NHID,)),
        "attn_w": nrm(ks[15], (NHID, NHID)),             # self.weight (xavier_normal ~ gaussian)
        "comb_w": nrm(ks[16], (NHID, 2 * NHID)),         # attn_combine: Linear(2*nhid, nhid)
        "comb_b": nrm(ks[17], (NHID,)),
        "out_w": nrm(ks[18], (VOCAB, NHID)),             # out: Linear(nhid, vocab)
        "out_b": nrm(ks[19], (VOCAB,)),
    }


def _reference(idx, img_features, hidden, enc, p):
    """Pure-JAX reference mirroring the PyTorch forward (dropout=0, GRU, nlayers=1)."""
    embedded = p["emb"][idx]
    img_emb = img_features @ p["lin_w"].T + p["lin_b"]
    x = (embedded + img_emb) / 2.0
    h = hidden[0]
    r = jax.nn.sigmoid(x @ p["w_ir"].T + p["b_ir"] + h @ p["w_hr"].T + p["b_hr"])
    z = jax.nn.sigmoid(x @ p["w_iz"].T + p["b_iz"] + h @ p["w_hz"].T + p["b_hz"])
    n = jnp.tanh(x @ p["w_in"].T + p["b_in"] + r * (h @ p["w_hn"].T + p["b_hn"]))
    h_new = (1.0 - z) * n + z * h
    score = jnp.einsum("bh,bsh->bs", h_new @ p["attn_w"], enc)
    attn_w = jax.nn.softmax(score, axis=-1)
    ctx = jnp.einsum("bs,bsh->bh", attn_w, enc)
    comb = jnp.concatenate([ctx, h_new], axis=-1) @ p["comb_w"].T + p["comb_b"]
    logits = comb @ p["out_w"].T + p["out_b"]
    return jax.nn.log_softmax(logits, axis=-1), h_new[None], attn_w


if __name__ == "__main__":
    key = jax.random.PRNGKey(0)
    k_param, k_idx, k_img, k_h, k_enc = jax.random.split(key, 5)

    params = init_params(k_param)
    packed = pack_params(params)      # one-time parameter packing (kept across decode steps)

    idx = jax.random.randint(k_idx, (BATCH,), 0, VOCAB, dtype=jnp.int32)
    img_features = jax.random.normal(k_img, (BATCH, IMGSIZE), dtype=jnp.float32)
    hidden = jax.random.normal(k_h, (NLAYERS, BATCH, NHID), dtype=jnp.float32) * 0.1
    encoder_outputs = jax.random.normal(k_enc, (BATCH, SEQ, NHID), dtype=jnp.float32)

    log_probs, h_out, attn_w = globally_attentive_decoder(
        idx, img_features, hidden, encoder_outputs, packed)
    jax.block_until_ready((log_probs, h_out, attn_w))

    ref_lp, ref_h, ref_a = _reference(idx, img_features, hidden, encoder_outputs, params)
    assert log_probs.shape == (BATCH, VOCAB)
    assert h_out.shape == (NLAYERS, BATCH, NHID)
    assert attn_w.shape == (BATCH, SEQ)
    assert jnp.allclose(log_probs, ref_lp, atol=1e-3, rtol=1e-3)
    assert jnp.allclose(h_out, ref_h, atol=1e-3, rtol=1e-3)
    assert jnp.allclose(attn_w, ref_a, atol=1e-3, rtol=1e-3)

    print("KERNEL_OK")
</pallas_src>

<mosaic_0001>
module attributes {stable_mosaic.version = 11 : i64} {
  func.func @_decoder_kernel(%arg0: memref<2xi32, #tpu.memory_space<smem>>, %arg1: memref<2x96xf32, #tpu.memory_space<vmem>>, %arg2: memref<2x8x32xf32, #tpu.memory_space<vmem>>, %arg3: memref<120x32xf32, #tpu.memory_space<vmem>>, %arg4: memref<32x338xf32, #tpu.memory_space<vmem>>, %arg5: memref<1x306xf32, #tpu.memory_space<vmem>>, %arg6: memref<2x128xf32, #tpu.memory_space<vmem>>) attributes {dimension_semantics = [], scalar_prefetch = 0 : i64, scratch_operands = 0 : i64, tpu.core_type = #tpu.core_type<tc>} {
    %c0 = arith.constant 0 : index
    %c0_0 = arith.constant 0 : index
    %0 = vector.load %arg3[%c0, %c0_0] : memref<120x32xf32, #tpu.memory_space<vmem>>, vector<56x32xf32>
    %c56 = arith.constant 56 : index
    %c0_1 = arith.constant 0 : index
    %1 = vector.load %arg3[%c56, %c0_1] : memref<120x32xf32, #tpu.memory_space<vmem>>, vector<64x32xf32>
    %c0_2 = arith.constant 0 : index
    %c0_3 = arith.constant 0 : index
    %2 = vector.load %arg4[%c0_2, %c0_3] : memref<32x338xf32, #tpu.memory_space<vmem>>, vector<32x96xf32>
    %c0_4 = arith.constant 0 : index
    %c96 = arith.constant 96 : index
    %3 = vector.load %arg4[%c0_4, %c96] : memref<32x338xf32, #tpu.memory_space<vmem>>, vector<32x96xf32>
    %c0_5 = arith.constant 0 : index
    %c192 = arith.constant 192 : index
    %4 = vector.load %arg4[%c0_5, %c192] : memref<32x338xf32, #tpu.memory_space<vmem>>, vector<32x32xf32>
    %c0_6 = arith.constant 0 : index
    %c224 = arith.constant 224 : index
    %5 = vector.load %arg4[%c0_6, %c224] : memref<32x338xf32, #tpu.memory_space<vmem>>, vector<32x32xf32>
    %c0_7 = arith.constant 0 : index
    %c256 = arith.constant 256 : index
    %6 = vector.load %arg4[%c0_7, %c256] : memref<32x338xf32, #tpu.memory_space<vmem>>, vector<32x32xf32>
    %c0_8 = arith.constant 0 : index
    %c288 = arith.constant 288 : index
    %7 = vector.load %arg4[%c0_8, %c288] : memref<32x338xf32, #tpu.memory_space<vmem>>, vector<32x50xf32>
    %c0_9 = arith.constant 0 : index
    %c0_10 = arith.constant 0 : index
    %8 = vector.load %arg5[%c0_9, %c0_10] : memref<1x306xf32, #tpu.memory_space<vmem>>, vector<1x96xf32>
    %c0_11 = arith.constant 0 : index
    %c96_12 = arith.constant 96 : index
    %9 = vector.load %arg5[%c0_11, %c96_12] : memref<1x306xf32, #tpu.memory_space<vmem>>, vector<1x96xf32>
    %c0_13 = arith.constant 0 : index
    %c192_14 = arith.constant 192 : index
    %10 = vector.load %arg5[%c0_13, %c192_14] : memref<1x306xf32, #tpu.memory_space<vmem>>, vector<1x32xf32>
    %c0_15 = arith.constant 0 : index
    %c224_16 = arith.constant 224 : index
    %11 = vector.load %arg5[%c0_15, %c224_16] : memref<1x306xf32, #tpu.memory_space<vmem>>, vector<1x32xf32>
    %c0_17 = arith.constant 0 : index
    %c256_18 = arith.constant 256 : index
    %12 = vector.load %arg5[%c0_17, %c256_18] : memref<1x306xf32, #tpu.memory_space<vmem>>, vector<1x50xf32>
    %13 = tpu.iota {dimensions = array<i32: 1>} : vector<1x56xi32>
    %c0_19 = arith.constant 0 : index
    %14 = memref.load %arg0[%c0_19] : memref<2xi32, #tpu.memory_space<smem>>
    %15 = vector.broadcast %14 : i32 to vector<1x56xi32>
    %16 = arith.cmpi eq, %13, %15 : vector<1x56xi32>
    %17 = arith.extui %16 : vector<1x56xi1> to vector<1x56xi32>
    %18 = arith.sitofp %17 : vector<1x56xi32> to vector<1x56xf32>
    %c1 = arith.constant 1 : index
    %19 = memref.load %arg0[%c1] : memref<2xi32, #tpu.memory_space<smem>>
    %20 = vector.broadcast %19 : i32 to vector<1x56xi32>
    %21 = arith.cmpi eq, %13, %20 : vector<1x56xi32>
    %22 = arith.extui %21 : vector<1x56xi1> to vector<1x56xi32>
    %23 = arith.sitofp %22 : vector<1x56xi32> to vector<1x56xf32>
    %24 = tpu.concatenate %18, %23 in 0 : vector<1x56xf32>, vector<1x56xf32> -> vector<2x56xf32>
    %cst = arith.constant dense<0.000000e+00> : vector<2x32xf32>
    %25 = tpu.matmul %24, %0, %cst {dimension_numbers = #tpu.dot_dimension_numbers<[1], [0], [0], [1], [0, 0, 1, 1], [], []>} : vector<2x56xf32>, vector<56x32xf32>, vector<2x32xf32> -> vector<2x32xf32>
    %c0_20 = arith.constant 0 : index
    %c0_21 = arith.constant 0 : index
    %26 = vector.load %arg1[%c0_20, %c0_21] : memref<2x96xf32, #tpu.memory_space<vmem>>, vector<2x64xf32>
    %c0_22 = arith.constant 0 : index
    %c64 = arith.constant 64 : index
    %27 = vector.load %arg1[%c0_22, %c64] : memref<2x96xf32, #tpu.memory_space<vmem>>, vector<2x32xf32>
    %cst_23 = arith.constant dense<0.000000e+00> : vector<2x32xf32>
    %28 = tpu.matmul %26, %1, %cst_23 {dimension_numbers = #tpu.dot_dimension_numbers<[1], [0], [0], [1], [0, 0, 1, 1], [], []>} : vector<2x64xf32>, vector<64x32xf32>, vector<2x32xf32> -> vector<2x32xf32>
    %29 = vector.broadcast %11 : vector<1x32xf32> to vector<2x32xf32>
    %30 = arith.addf %28, %29 : vector<2x32xf32>
    %31 = arith.addf %25, %30 : vector<2x32xf32>
    %cst_24 = arith.constant 5.000000e-01 : f32
    %32 = vector.broadcast %cst_24 : f32 to vector<2x32xf32>
    %33 = arith.mulf %31, %32 : vector<2x32xf32>
    %cst_25 = arith.constant dense<0.000000e+00> : vector<2x96xf32>
    %34 = tpu.matmul %33, %2, %cst_25 {dimension_numbers = #tpu.dot_dimension_numbers<[1], [0], [0], [1], [0, 0, 1, 1], [], []>} : vector<2x32xf32>, vector<32x96xf32>, vector<2x96xf32> -> vector<2x96xf32>
    %35 = vector.broadcast %8 : vector<1x96xf32> to vector<2x96xf32>
    %36 = arith.addf %34, %35 : vector<2x96xf32>
    %cst_26 = arith.constant dense<0.000000e+00> : vector<2x96xf32>
    %37 = tpu.matmul %27, %3, %cst_26 {dimension_numbers = #tpu.dot_dimension_numbers<[1], [0], [0], [1], [0, 0, 1, 1], [], []>} : vector<2x32xf32>, vector<32x96xf32>, vector<2x96xf32> -> vector<2x96xf32>
    %38 = vector.broadcast %9 : vector<1x96xf32> to vector<2x96xf32>
    %39 = arith.addf %37, %38 : vector<2x96xf32>
    %40 = vector.extract_strided_slice %36 {offsets = [0, 0], sizes = [2, 32], strides = [1, 1]} : vector<2x96xf32> to vector<2x32xf32>
    %41 = vector.extract_strided_slice %39 {offsets = [0, 0], sizes = [2, 32], strides = [1, 1]} : vector<2x96xf32> to vector<2x32xf32>
    %42 = arith.addf %40, %41 : vector<2x32xf32>
    %43 = arith.negf %42 : vector<2x32xf32>
    %44 = math.exp %43 : vector<2x32xf32>
    %cst_27 = arith.constant 1.000000e+00 : f32
    %45 = vector.broadcast %cst_27 : f32 to vector<2x32xf32>
    %46 = arith.addf %45, %44 : vector<2x32xf32>
    %47 = arith.divf %45, %46 : vector<2x32xf32>
    %48 = vector.extract_strided_slice %36 {offsets = [0, 32], sizes = [2, 32], strides = [1, 1]} : vector<2x96xf32> to vector<2x32xf32>
    %49 = vector.extract_strided_slice %39 {offsets = [0, 32], sizes = [2, 32], strides = [1, 1]} : vector<2x96xf32> to vector<2x32xf32>
    %50 = arith.addf %48, %49 : vector<2x32xf32>
    %51 = arith.negf %50 : vector<2x32xf32>
    %52 = math.exp %51 : vector<2x32xf32>
    %cst_28 = arith.constant 1.000000e+00 : f32
    %53 = vector.broadcast %cst_28 : f32 to vector<2x32xf32>
    %54 = arith.addf %53, %52 : vector<2x32xf32>
    %55 = arith.divf %53, %54 : vector<2x32xf32>
    %56 = vector.extract_strided_slice %36 {offsets = [0, 64], sizes = [2, 32], strides = [1, 1]} : vector<2x96xf32> to vector<2x32xf32>
    %57 = vector.extract_strided_slice %39 {offsets = [0, 64], sizes = [2, 32], strides = [1, 1]} : vector<2x96xf32> to vector<2x32xf32>
    %58 = arith.mulf %47, %57 : vector<2x32xf32>
    %59 = arith.addf %56, %58 : vector<2x32xf32>
    %60 = math.tanh %59 : vector<2x32xf32>
    %cst_29 = arith.constant 1.000000e+00 : f32
    %61 = vector.broadcast %cst_29 : f32 to vector<2x32xf32>
    %62 = arith.subf %61, %55 : vector<2x32xf32>
    %63 = arith.mulf %62, %60 : vector<2x32xf32>
    %64 = arith.mulf %55, %27 : vector<2x32xf32>
    %65 = arith.addf %63, %64 : vector<2x32xf32>
    %c0_30 = arith.constant 0 : index
    %c0_31 = arith.constant 0 : index
    %c0_32 = arith.constant 0 : index
    %66 = vector.load %arg2[%c0_30, %c0_31, %c0_32] : memref<2x8x32xf32, #tpu.memory_space<vmem>>, vector<2x8x32xf32>
    %cst_33 = arith.constant dense<0.000000e+00> : vector<2x32xf32>
    %67 = tpu.matmul %65, %4, %cst_33 {dimension_numbers = #tpu.dot_dimension_numbers<[1], [0], [0], [1], [0, 0, 1, 1], [], []>} : vector<2x32xf32>, vector<32x32xf32>, vector<2x32xf32> -> vector<2x32xf32>
    %68 = vector.shape_cast %67 : vector<2x32xf32> to vector<2x1x32xf32>
    "tpu.trace_start"() <{level = 10 : i32, message = "bqh,bsh->bqs"}> : () -> ()
    %cst_34 = arith.constant dense<0.000000e+00> : vector<2x1x8xf32>
    %69 = tpu.matmul %68, %66, %cst_34 {dimension_numbers = #tpu.dot_dimension_numbers<[2], [2], [1], [1], [0, 0, 0, 1, 1, 1], [0], [0]>} : vector<2x1x32xf32>, vector<2x8x32xf32>, vector<2x1x8xf32> -> vector<2x1x8xf32>
    "tpu.trace_stop"() : () -> ()
    %cst_35 = arith.constant dense<0xFF800000> : vector<2x1xf32>
    %70 = vector.multi_reduction <maximumf>, %69, %cst_35 [2] : vector<2x1x8xf32> to vector<2x1xf32>
    %71 = vector.shape_cast %70 : vector<2x1xf32> to vector<2x1x1xf32>
    %72 = vector.broadcast %71 : vector<2x1x1xf32> to vector<2x1x8xf32>
    %73 = arith.subf %69, %72 : vector<2x1x8xf32>
    %74 = math.exp %73 : vector<2x1x8xf32>
    %cst_36 = arith.constant dense<0.000000e+00> : vector<2x1xf32>
    %75 = vector.multi_reduction <add>, %74, %cst_36 [2] : vector<2x1x8xf32> to vector<2x1xf32>
    %76 = vector.shape_cast %75 : vector<2x1xf32> to vector<2x1x1xf32>
    %77 = tpu.reciprocal %76 : vector<2x1x1xf32> -> vector<2x1x1xf32>
    %78 = vector.broadcast %77 : vector<2x1x1xf32> to vector<2x1x8xf32>
    %79 = arith.mulf %74, %78 : vector<2x1x8xf32>
    "tpu.trace_start"() <{level = 10 : i32, message = "bqs,bsh->bqh"}> : () -> ()
    %cst_37 = arith.constant dense<0.000000e+00> : vector<2x1x32xf32>
    %80 = tpu.matmul %79, %66, %cst_37 {dimension_numbers = #tpu.dot_dimension_numbers<[2], [1], [1], [2], [0, 0, 0, 1, 1, 2], [0], [0]>} : vector<2x1x8xf32>, vector<2x8x32xf32>, vector<2x1x32xf32> -> vector<2x1x32xf32>
    "tpu.trace_stop"() : () -> ()
    %81 = vector.shape_cast %80 : vector<2x1x32xf32> to vector<2x32xf32>
    %82 = vector.shape_cast %79 : vector<2x1x8xf32> to vector<2x8xf32>
    %cst_38 = arith.constant dense<0.000000e+00> : vector<2x32xf32>
    %83 = tpu.matmul %81, %5, %cst_38 {dimension_numbers = #tpu.dot_dimension_numbers<[1], [0], [0], [1], [0, 0, 1, 1], [], []>} : vector<2x32xf32>, vector<32x32xf32>, vector<2x32xf32> -> vector<2x32xf32>
    %cst_39 = arith.constant dense<0.000000e+00> : vector<2x32xf32>
    %84 = tpu.matmul %65, %6, %cst_39 {dimension_numbers = #tpu.dot_dimension_numbers<[1], [0], [0], [1], [0, 0, 1, 1], [], []>} : vector<2x32xf32>, vector<32x32xf32>, vector<2x32xf32> -> vector<2x32xf32>
    %85 = arith.addf %83, %84 : vector<2x32xf32>
    %86 = vector.broadcast %10 : vector<1x32xf32> to vector<2x32xf32>
    %87 = arith.addf %85, %86 : vector<2x32xf32>
    %cst_40 = arith.constant dense<0.000000e+00> : vector<2x50xf32>
    %88 = tpu.matmul %87, %7, %cst_40 {dimension_numbers = #tpu.dot_dimension_numbers<[1], [0], [0], [1], [0, 0, 1, 1], [], []>} : vector<2x32xf32>, vector<32x50xf32>, vector<2x50xf32> -> vector<2x50xf32>
    %89 = vector.broadcast %12 : vector<1x50xf32> to vector<2x50xf32>
    %90 = arith.addf %88, %89 : vector<2x50xf32>
    %cst_41 = arith.constant dense<0xFF800000> : vector<2xf32>
    %91 = vector.multi_reduction <maximumf>, %90, %cst_41 [1] : vector<2x50xf32> to vector<2xf32>
    %92 = vector.shape_cast %91 : vector<2xf32> to vector<2x1xf32>
    %93 = vector.broadcast %92 : vector<2x1xf32> to vector<2x50xf32>
    %94 = arith.subf %90, %93 : vector<2x50xf32>
    %95 = math.exp %94 : vector<2x50xf32>
    %cst_42 = arith.constant dense<0.000000e+00> : vector<2xf32>
    %96 = vector.multi_reduction <add>, %95, %cst_42 [1] : vector<2x50xf32> to vector<2xf32>
    %97 = vector.shape_cast %96 : vector<2xf32> to vector<2x1xf32>
    %98 = math.log %97 : vector<2x1xf32>
    %99 = vector.broadcast %98 : vector<2x1xf32> to vector<2x50xf32>
    %100 = arith.subf %94, %99 : vector<2x50xf32>
    %cst_43 = arith.constant 0.000000e+00 : f32
    %101 = vector.broadcast %cst_43 : f32 to vector<2x38xf32>
    %102 = tpu.concatenate %100, %65, %82, %101 in 1 : vector<2x50xf32>, vector<2x32xf32>, vector<2x8xf32>, vector<2x38xf32> -> vector<2x128xf32>
    %c0_44 = arith.constant 0 : index
    %c0_45 = arith.constant 0 : index
    %103 = vector.load %arg6[%c0_44, %c0_45] : memref<2x128xf32, #tpu.memory_space<vmem>>, vector<2x128xf32>
    tpu.vector_store %arg6[%c0_44, %c0_45], %102 {strides = array<i32>} : memref<2x128xf32, #tpu.memory_space<vmem>>, vector<2x128xf32>,
    return
  }
}

</mosaic_0001>

<llo_original>
// kernel: globally_attentive_decoder.1
$region0: #{globally_attentive_decoder.1}
  #allocation0 [shape = 'u32[]', space=smem, size = 0x4, offset = 0x4, fixed_abs, tag = 'smem constant byte address 0x4 - core index']
  #allocation1 [shape = 'u32[144,128]{1,0:T(1,128)}', space=vmem, size = 0x12000, scoped, tag = 'internal scratch']
  %s0 = inlined_call_operand.vmem [shape: s32[2], index: 0, kind: input, shape index: {}]
  %s1 = inlined_call_operand.vmem [shape: f32[2,96], index: 1, kind: input, shape index: {}]
  %s2 = inlined_call_operand.vmem [shape: f32[2,8,32], index: 2, kind: input, shape index: {}]
  %s3 = inlined_call_operand.vmem [shape: f32[120,32], index: 3, kind: input, shape index: {}]
  %s4 = inlined_call_operand.vmem [shape: f32[32,338], index: 4, kind: input, shape index: {}]
  %s5 = inlined_call_operand.vmem [shape: f32[1,306], index: 5, kind: input, shape index: {}]
  %s6 = inlined_call_operand.vmem [shape: f32[2,128], index: 6, kind: output, shape index: {}]
  %s7 = sld [smem:[#allocation0]]
  $region38: #{globally_attentive_decoder.1} parent=0
    _
  %s9 = ssub.s32 1, %s7
  %s10 = scalar_select 0, %s9, %s7
  $region1: #{globally_attentive_decoder.1} parent=0
    #allocation2 [shape = 'u8[512]{0}', space=smem, size = 0x200, scoped, tag = 'input window, operand 0, single buffered']
    #allocation3 [shape = 's32[1]{0}', space=sflag, size = 0x4, scoped, tag = 'scoped memory for globally_attentive_decoder.1']
    %11 = vsyncpa [#allocation3], 0
    // Predicated region
    $region2: #{globally_attentive_decoder.1} parent=1 // pred_check
      _
    $region3: #{globally_attentive_decoder.1} parent=1 // pred_check_branch
      %13 = sbr.rel (0) target = $region5
    $region4: #{globally_attentive_decoder.1} parent=1 // pred_region
      %s15 = ssub.s32 16, 16
      %16 = vsyncadd [#allocation3], %s15
      %s18 = sshll.u32 %s0, 4
      %s19 = int_to_ptr.vmem [resolvable:$true] %s18
      %21 = dma.vmem_to_smem %s19, 16, [#allocation2], [#allocation3]
    $region5: #{globally_attentive_decoder.1} parent=1 // pred_fallthru
      _
    // Predicated region
    $region6: #{globally_attentive_decoder.1} parent=1 // pred_check
      _
    $region7: #{globally_attentive_decoder.1} parent=1 // pred_check_branch
      %23 = sbr.rel (0) target = $region9
    $region8: #{globally_attentive_decoder.1} parent=1 // pred_region
      _
    $region9: #{globally_attentive_decoder.1} parent=1 // pred_fallthru
      _
    // Predicated region
    $region10: #{globally_attentive_decoder.1} parent=1 // pred_check
      _
    $region11: #{globally_attentive_decoder.1} parent=1 // pred_check_branch
      %25 = sbr.rel (0) target = $region13
    $region12: #{globally_attentive_decoder.1} parent=1 // pred_region
      _
    $region13: #{globally_attentive_decoder.1} parent=1 // pred_fallthru
      _
    // Predicated region
    $region14: #{globally_attentive_decoder.1} parent=1 // pred_check
      _
    $region15: #{globally_attentive_decoder.1} parent=1 // pred_check_branch
      %27 = sbr.rel (0) target = $region17
    $region16: #{globally_attentive_decoder.1} parent=1 // pred_region
      _
    $region17: #{globally_attentive_decoder.1} parent=1 // pred_fallthru
      _
    // Predicated region
    $region18: #{globally_attentive_decoder.1} parent=1 // pred_check
      _
    $region19: #{globally_attentive_decoder.1} parent=1 // pred_check_branch
      %29 = sbr.rel (0) target = $region21
    $region20: #{globally_attentive_decoder.1} parent=1 // pred_region
      _
    $region21: #{globally_attentive_decoder.1} parent=1 // pred_fallthru
      _
    // Predicated region
    $region22: #{globally_attentive_decoder.1} parent=1 // pred_check
      _
    $region23: #{globally_attentive_decoder.1} parent=1 // pred_check_branch
      %31 = sbr.rel (0) target = $region25
    $region24: #{globally_attentive_decoder.1} parent=1 // pred_region
      _
    $region25: #{globally_attentive_decoder.1} parent=1 // pred_fallthru
      _
    // Predicated region
    $region26: #{globally_attentive_decoder.1} parent=1 // pred_check
      _
    $region27: #{globally_attentive_decoder.1} parent=1 // pred_check_branch
      %33 = sbr.rel (0) target = $region29
    $region28: #{globally_attentive_decoder.1} parent=1 // pred_region
      %34 = dma.done [#allocation3], 16
    $region29: #{globally_attentive_decoder.1} parent=1 // pred_fallthru
      _
    %35 = sfence
    %v36 = vld [vmem:[%s3] sm:$0xff]
    %v37 = vld [vmem:[%s3 + $0x8] sm:$0xff]
    %v38 = vld [vmem:[%s3 + $0x10] sm:$0xff]
    %v39 = vld [vmem:[%s3 + $0x18] sm:$0xff]
    %v40 = vld [vmem:[%s3 + $0x20] sm:$0xff]
    %v41 = vld [vmem:[%s3 + $0x28] sm:$0xff]
    %v42 = vld [vmem:[%s3 + $0x30] sm:$0xff]
    %v43 = vld [vmem:[%s3 + $0x38] sm:$0xff]
    %v44 = vld [vmem:[%s3 + $0x40] sm:$0xff]
    %v45 = vld [vmem:[%s3 + $0x48] sm:$0xff]
    %v46 = vld [vmem:[%s3 + $0x50] sm:$0xff]
    %v47 = vld [vmem:[%s3 + $0x58] sm:$0xff]
    %v48 = vld [vmem:[%s3 + $0x60] sm:$0xff]
    %v49 = vld [vmem:[%s3 + $0x68] sm:$0xff]
    %v50 = vld [vmem:[%s3 + $0x70] sm:$0xff]
    %v51 = vld [vmem:[%s4] sm:$0xff]
    %v52 = vld [vmem:[%s4 + $0x18] sm:$0xff]
    %v53 = vld [vmem:[%s4 + $0x30] sm:$0xff]
    %v54 = vld [vmem:[%s4 + $0x48] sm:$0xff]
    %v55 = vld [vmem:[%s4 + $0x8] sm:$0xff]
    %v56 = vld [vmem:[%s4 + $0x20] sm:$0xff]
    %v57 = vld [vmem:[%s4 + $0x38] sm:$0xff]
    %v58 = vld [vmem:[%s4 + $0x50] sm:$0xff]
    %v59 = vld [vmem:[%s4 + $0x10] sm:$0xff]
    %v60 = vld [vmem:[%s4 + $0x28] sm:$0xff]
    %v61 = vld [vmem:[%s4 + $0x40] sm:$0xff]
    %v62 = vld [vmem:[%s4 + $0x58] sm:$0xff]
    %v63 = vld [vmem:[%s5] sm:$0x1]
    %v64 = vld [vmem:[%s5] sm:$0x3]
    %v65 = vld [vmem:[%s5 + $0x1] sm:$0x1]
    %v66 = vld [vmem:[%s5 + $0x2] sm:$0x1]
    %v67 = vlaneseq
    %v68 = vand.u32 %v67, 127
    %s69 = sld [smem:[#allocation2]]
    %v70 = vstv %s69
    %vm71 = vcmp.eq.s32.totalorder %v68, %v70
    %v72 = vsel %vm71, 1, 0
    %v73 = vcvt.s32.f32 %v72
    %s74 = sld [smem:[#allocation2 + $0x1]]
    %v75 = vstv %s74
    %vm76 = vcmp.eq.s32.totalorder %v68, %v75
    %v77 = vsel %vm76, 1, 0
    %v78 = vcvt.s32.f32 %v77
    %vm79 = vcmask 1040384
    %v80 = vsel %vm79, %v73, %v78
    %v81 = vld [vmem:[%s1] sm:$0x3]
    %v83 = vlaneseq
    %v84 = vshrl.u32 %v83, 7
    %v85 = vsub.s32 0, %v84
    %v86 = vrot.slane %v65, %v85
    %87 = vrot.lane.b32.xlu0 %v86, 32
    %v88 = vpop.permute.xlu0 %87
    %vm90 = vcmask 523264
    %v92 = vsel %vm90, %v81, 0
    %94 = vmatprep.subr.mxu0 0.0
    %95 = vmatpush1.msra.mxu0 %v43
    %96 = vmatprep.subr.mxu0 0.0
    %97 = vmatpush1.msra.mxu0 %v44
    %98 = vmatprep.subr.mxu0 0.0
    %99 = vmatpush1.msra.mxu0 %v45
    %100 = vmatprep.subr.mxu0 0.0
    %101 = vmatpush1.msra.mxu0 %v46
    %102 = vmatprep.subr.mxu0 0.0
    %103 = vmatpush1.msra.mxu0 %v47
    %104 = vmatprep.subr.mxu0 0.0
    %105 = vmatpush1.msra.mxu0 %v48
    %106 = vmatprep.subr.mxu0 0.0
    %107 = vmatpush1.msra.mxu0 %v49
    %108 = vmatprep.subr.mxu0 0.0
    %109 = vmatpush1.msra.mxu0 %v50
    %110 = vmatprep.subr.mxu0 0.0
    %111 = vmatpush1.msra.mxu0 0.0
    %112 = vmatprep.subr.mxu0 0.0
    %113 = vmatpush1.msra.mxu0 0.0
    %114 = vmatprep.subr.mxu0 0.0
    %115 = vmatpush1.msra.mxu0 0.0
    %116 = vmatprep.subr.mxu0 0.0
    %117 = vmatpush1.msra.mxu0 0.0
    %118 = vmatprep.subr.mxu0 0.0
    %119 = vmatpush1.msra.mxu0 0.0
    %120 = vmatprep.subr.mxu0 0.0
    %121 = vmatpush1.msra.mxu0 0.0
    %122 = vmatprep.subr.mxu0 0.0
    %123 = vmatpush1.msra.mxu0 0.0
    %124 = vmatprep.subr.mxu0 0.0
    %125 = vmatpush1.msra.mxu0 0.0
    %126 = vmatprep.subr.mxu0 0.0
    %127 = vmatpush1.msra.mxu0 0.0
    %128 = vmatprep.subr.mxu0 0.0
    %129 = vmatpush1.msra.mxu0 0.0
    %130 = vmatprep.subr.mxu0 0.0
    %131 = vmatpush1.msra.mxu0 0.0
    %132 = vmatprep.subr.mxu0 0.0
    %133 = vmatpush1.msra.mxu0 0.0
    %134 = vmatprep.subr.mxu0 0.0
    %135 = vmatpush1.msra.mxu0 0.0
    %136 = vmatprep.subr.mxu0 0.0
    %137 = vmatpush1.msra.mxu0 0.0
    %138 = vmatprep.subr.mxu0 0.0
    %139 = vmatpush1.msra.mxu0 0.0
    %140 = vmatprep.subr.mxu0 0.0
    %141 = vmatpush1.msra.mxu0 0.0
    %142 = vmatprep.subr.mxu0 0.0
    %143 = vmatpush1.msra.mxu0 0.0
    %144 = vmatprep.subr.mxu0 0.0
    %145 = vmatpush1.msra.mxu0 0.0
    %146 = vmatprep.subr.mxu0 0.0
    %147 = vmatpush1.msra.mxu0 0.0
    %148 = vmatprep.subr.mxu0 0.0
    %149 = vmatpush1.msra.mxu0 0.0
    %150 = vmatprep.subr.mxu0 0.0
    %151 = vmatpush1.msra.mxu0 0.0
    %152 = vmatprep.subr.mxu0 0.0
    %153 = vmatpush1.msra.mxu0 0.0
    %154 = vmatprep.subr.mxu0 0.0
    %155 = vmatpush1.msra.mxu0 0.0
    %156 = vmatprep.subr.mxu0 0.0
    %157 = vmatpush1.msra.mxu0 0.0
    %158 = vmatprep.mubr.f32.mxu0 0.0
    %159 = vmatmul.mubr.f32.gmra.mrb[0].mxu0 %v92
    %v160 = vpop.f32.mrb[0].mxu0
    %v161 = vadd.f32 %v88, %v160
    %v162 = vpop.f32.mrb[0].mxu0
    %163 = vdwg.mxu0
    %vm164 = vcmask 457728
    %v166 = vsel %vm164, %v80, 0
    %168 = vmatprep.subr.mxu0 0.0
    %169 = vmatpush1.msra.mxu0 %v36
    %170 = vmatprep.subr.mxu0 0.0
    %171 = vmatpush1.msra.mxu0 %v37
    %172 = vmatprep.subr.mxu0 0.0
    %173 = vmatpush1.msra.mxu0 %v38
    %174 = vmatprep.subr.mxu0 0.0
    %175 = vmatpush1.msra.mxu0 %v39
    %176 = vmatprep.subr.mxu0 0.0
    %177 = vmatpush1.msra.mxu0 %v40
    %178 = vmatprep.subr.mxu0 0.0
    %179 = vmatpush1.msra.mxu0 %v41
    %180 = vmatprep.subr.mxu0 0.0
    %181 = vmatpush1.msra.mxu0 %v42
    %182 = vmatprep.subr.mxu0 0.0
    %183 = vmatpush1.msra.mxu0 0.0
    %184 = vmatprep.subr.mxu0 0.0
    %185 = vmatpush1.msra.mxu0 0.0
    %186 = vmatprep.subr.mxu0 0.0
    %187 = vmatpush1.msra.mxu0 0.0
    %188 = vmatprep.subr.mxu0 0.0
    %189 = vmatpush1.msra.mxu0 0.0
    %190 = vmatprep.subr.mxu0 0.0
    %191 = vmatpush1.msra.mxu0 0.0
    %192 = vmatprep.subr.mxu0 0.0
    %193 = vmatpush1.msra.mxu0 0.0
    %194 = vmatprep.subr.mxu0 0.0
    %195 = vmatpush1.msra.mxu0 0.0
    %196 = vmatprep.subr.mxu0 0.0
    %197 = vmatpush1.msra.mxu0 0.0
    %198 = vmatprep.subr.mxu0 0.0
    %199 = vmatpush1.msra.mxu0 0.0
    %200 = vmatprep.subr.mxu0 0.0
    %201 = vmatpush1.msra.mxu0 0.0
    %202 = vmatprep.subr.mxu0 0.0
    %203 = vmatpush1.msra.mxu0 0.0
    %204 = vmatprep.subr.mxu0 0.0
    %205 = vmatpush1.msra.mxu0 0.0
    %206 = vmatprep.subr.mxu0 0.0
    %207 = vmatpush1.msra.mxu0 0.0
    %208 = vmatprep.subr.mxu0 0.0
    %209 = vmatpush1.msra.mxu0 0.0
    %210 = vmatprep.subr.mxu0 0.0
    %211 = vmatpush1.msra.mxu0 0.0
    %212 = vmatprep.subr.mxu0 0.0
    %213 = vmatpush1.msra.mxu0 0.0
    %214 = vmatprep.subr.mxu0 0.0
    %215 = vmatpush1.msra.mxu0 0.0
    %216 = vmatprep.subr.mxu0 0.0
    %217 = vmatpush1.msra.mxu0 0.0
    %218 = vmatprep.subr.mxu0 0.0
    %219 = vmatpush1.msra.mxu0 0.0
    %220 = vmatprep.subr.mxu0 0.0
    %221 = vmatpush1.msra.mxu0 0.0
    %222 = vmatprep.subr.mxu0 0.0
    %223 = vmatpush1.msra.mxu0 0.0
    %224 = vmatprep.subr.mxu0 0.0
    %225 = vmatpush1.msra.mxu0 0.0
    %226 = vmatprep.subr.mxu0 0.0
    %227 = vmatpush1.msra.mxu0 0.0
    %228 = vmatprep.subr.mxu0 0.0
    %229 = vmatpush1.msra.mxu0 0.0
    %230 = vmatprep.subr.mxu0 0.0
    %231 = vmatpush1.msra.mxu0 0.0
    %232 = vmatprep.mubr.f32.mxu0 0.0
    %233 = vmatmul.mubr.f32.gmra.mrb[0].mxu0 %v166
    %v234 = vpop.f32.mrb[0].mxu0
    %v235 = vadd.f32 %v161, %v234
    %v236 = vpop.f32.mrb[0].mxu0
    %237 = vdwg.mxu0
    %v238 = vmul.f32 %v235, 0.5
    %v240 = vlaneseq
    %v241 = vshrl.u32 %v240, 7
    %v242 = vsub.s32 0, %v241
    %v243 = vrot.slane %v63, %v242
    %vm245 = vcmask 261120
    %v247 = vsel %vm245, %v238, 0
    %249 = vmatprep.subr.mxu0 0.0
    %250 = vmatpush1.msra.mxu0 %v51
    %251 = vmatprep.subr.mxu0 0.0
    %252 = vmatpush1.msra.mxu0 %v52
    %253 = vmatprep.subr.mxu0 0.0
    %254 = vmatpush1.msra.mxu0 %v53
    %255 = vmatprep.subr.mxu0 0.0
    %256 = vmatpush1.msra.mxu0 %v54
    %257 = vmatprep.subr.mxu0 0.0
    %258 = vmatpush1.msra.mxu0 0.0
    %259 = vmatprep.subr.mxu0 0.0
    %260 = vmatpush1.msra.mxu0 0.0
    %261 = vmatprep.subr.mxu0 0.0
    %262 = vmatpush1.msra.mxu0 0.0
    %263 = vmatprep.subr.mxu0 0.0
    %264 = vmatpush1.msra.mxu0 0.0
    %265 = vmatprep.subr.mxu0 0.0
    %266 = vmatpush1.msra.mxu0 0.0
    %267 = vmatprep.subr.mxu0 0.0
    %268 = vmatpush1.msra.mxu0 0.0
    %269 = vmatprep.subr.mxu0 0.0
    %270 = vmatpush1.msra.mxu0 0.0
    %271 = vmatprep.subr.mxu0 0.0
    %272 = vmatpush1.msra.mxu0 0.0
    %273 = vmatprep.subr.mxu0 0.0
    %274 = vmatpush1.msra.mxu0 0.0
    %275 = vmatprep.subr.mxu0 0.0
    %276 = vmatpush1.msra.mxu0 0.0
    %277 = vmatprep.subr.mxu0 0.0
    %278 = vmatpush1.msra.mxu0 0.0
    %279 = vmatprep.subr.mxu0 0.0
    %280 = vmatpush1.msra.mxu0 0.0
    %281 = vmatprep.subr.mxu0 0.0
    %282 = vmatpush1.msra.mxu0 0.0
    %283 = vmatprep.subr.mxu0 0.0
    %284 = vmatpush1.msra.mxu0 0.0
    %285 = vmatprep.subr.mxu0 0.0
    %286 = vmatpush1.msra.mxu0 0.0
    %287 = vmatprep.subr.mxu0 0.0
    %288 = vmatpush1.msra.mxu0 0.0
    %289 = vmatprep.subr.mxu0 0.0
    %290 = vmatpush1.msra.mxu0 0.0
    %291 = vmatprep.subr.mxu0 0.0
    %292 = vmatpush1.msra.mxu0 0.0
    %293 = vmatprep.subr.mxu0 0.0
    %294 = vmatpush1.msra.mxu0 0.0
    %295 = vmatprep.subr.mxu0 0.0
    %296 = vmatpush1.msra.mxu0 0.0
    %297 = vmatprep.subr.mxu0 0.0
    %298 = vmatpush1.msra.mxu0 0.0
    %299 = vmatprep.subr.mxu0 0.0
    %300 = vmatpush1.msra.mxu0 0.0
    %301 = vmatprep.subr.mxu0 0.0
    %302 = vmatpush1.msra.mxu0 0.0
    %303 = vmatprep.subr.mxu0 0.0
    %304 = vmatpush1.msra.mxu0 0.0
    %305 = vmatprep.subr.mxu0 0.0
    %306 = vmatpush1.msra.mxu0 0.0
    %307 = vmatprep.subr.mxu0 0.0
    %308 = vmatpush1.msra.mxu0 0.0
    %309 = vmatprep.subr.mxu0 0.0
    %310 = vmatpush1.msra.mxu0 0.0
    %311 = vmatprep.subr.mxu0 0.0
    %312 = vmatpush1.msra.mxu0 0.0
    %313 = vmatprep.mubr.f32.mxu0 0.0
    %314 = vmatmul.mubr.f32.gmra.mrb[0].mxu0 %v247
    %v315 = vpop.f32.mrb[0].mxu0
    %v316 = vadd.f32 %v243, %v315
    %v317 = vpop.f32.mrb[0].mxu0
    %318 = vdwg.mxu0
    %v320 = vlaneseq
    %v321 = vshrl.u32 %v320, 7
    %v322 = vsub.s32 0, %v321
    %v323 = vrot.slane %v64, %v322
    %v324 = vlaneseq
    %v325 = vshrl.u32 %v324, 7
    %v326 = vsub.s32 1, %v325
    %v327 = vrot.slane %v64, %v326
    %328 = vrot.lane.b32.xlu0 %v81, 64
    %v329 = vpop.permute.xlu0 %328
    %338 = vrot.lane.b32.xlu0 %v51, 32
    %v339 = vpop.permute.xlu0 %338
    %340 = vrot.lane.b32.xlu0 %v55, 32
    %v341 = vpop.permute.xlu0 %340
    %342 = vrot.lane.b32.xlu0 %v52, 32
    %v343 = vpop.permute.xlu0 %342
    %344 = vrot.lane.b32.xlu0 %v56, 32
    %v345 = vpop.permute.xlu0 %344
    %346 = vrot.lane.b32.xlu0 %v53, 32
    %v347 = vpop.permute.xlu0 %346
    %348 = vrot.lane.b32.xlu0 %v57, 32
    %v349 = vpop.permute.xlu0 %348
    %350 = vrot.lane.b32.xlu0 %v54, 32
    %v351 = vpop.permute.xlu0 %350
    %352 = vrot.lane.b32.xlu0 %v58, 32
    %v353 = vpop.permute.xlu0 %352
    %v354 = vsel %vm245, %v339, %v341
    %v355 = vsel %vm245, %v343, %v345
    %v356 = vsel %vm245, %v347, %v349
    %v357 = vsel %vm245, %v351, %v353
    %362 = vrot.lane.b32.xlu0 %v323, 32
    %v363 = vpop.permute.xlu0 %362
    %364 = vrot.lane.b32.xlu0 %v327, 32
    %v365 = vpop.permute.xlu0 %364
    %v366 = vsel %vm245, %v363, %v365
    %v368 = vsel %vm245, %v329, 0
    %370 = vmatprep.subr.mxu0 0.0
    %371 = vmatpush1.msra.mxu0 %v354
    %372 = vmatprep.subr.mxu0 0.0
    %373 = vmatpush1.msra.mxu0 %v355
    %374 = vmatprep.subr.mxu0 0.0
    %375 = vmatpush1.msra.mxu0 %v356
    %376 = vmatprep.subr.mxu0 0.0
    %377 = vmatpush1.msra.mxu0 %v357
    %378 = vmatprep.subr.mxu0 0.0
    %379 = vmatpush1.msra.mxu0 0.0
    %380 = vmatprep.subr.mxu0 0.0
    %381 = vmatpush1.msra.mxu0 0.0
    %382 = vmatprep.subr.mxu0 0.0
    %383 = vmatpush1.msra.mxu0 0.0
    %384 = vmatprep.subr.mxu0 0.0
    %385 = vmatpush1.msra.mxu0 0.0
    %386 = vmatprep.subr.mxu0 0.0
    %387 = vmatpush1.msra.mxu0 0.0
    %388 = vmatprep.subr.mxu0 0.0
    %389 = vmatpush1.msra.mxu0 0.0
    %390 = vmatprep.subr.mxu0 0.0
    %391 = vmatpush1.msra.mxu0 0.0
    %392 = vmatprep.subr.mxu0 0.0
    %393 = vmatpush1.msra.mxu0 0.0
    %394 = vmatprep.subr.mxu0 0.0
    %395 = vmatpush1.msra.mxu0 0.0
    %396 = vmatprep.subr.mxu0 0.0
    %397 = vmatpush1.msra.mxu0 0.0
    %398 = vmatprep.subr.mxu0 0.0
    %399 = vmatpush1.msra.mxu0 0.0
    %400 = vmatprep.subr.mxu0 0.0
    %401 = vmatpush1.msra.mxu0 0.0
    %402 = vmatprep.subr.mxu0 0.0
    %403 = vmatpush1.msra.mxu0 0.0
    %404 = vmatprep.subr.mxu0 0.0
    %405 = vmatpush1.msra.mxu0 0.0
    %406 = vmatprep.subr.mxu0 0.0
    %407 = vmatpush1.msra.mxu0 0.0
    %408 = vmatprep.subr.mxu0 0.0
    %409 = vmatpush1.msra.mxu0 0.0
    %410 = vmatprep.subr.mxu0 0.0
    %411 = vmatpush1.msra.mxu0 0.0
    %412 = vmatprep.subr.mxu0 0.0
    %413 = vmatpush1.msra.mxu0 0.0
    %414 = vmatprep.subr.mxu0 0.0
    %415 = vmatpush1.msra.mxu0 0.0
    %416 = vmatprep.subr.mxu0 0.0
    %417 = vmatpush1.msra.mxu0 0.0
    %418 = vmatprep.subr.mxu0 0.0
    %419 = vmatpush1.msra.mxu0 0.0
    %420 = vmatprep.subr.mxu0 0.0
    %421 = vmatpush1.msra.mxu0 0.0
    %422 = vmatprep.subr.mxu0 0.0
    %423 = vmatpush1.msra.mxu0 0.0
    %424 = vmatprep.subr.mxu0 0.0
    %425 = vmatpush1.msra.mxu0 0.0
    %426 = vmatprep.subr.mxu0 0.0
    %427 = vmatpush1.msra.mxu0 0.0
    %428 = vmatprep.subr.mxu0 0.0
    %429 = vmatpush1.msra.mxu0 0.0
    %430 = vmatprep.subr.mxu0 0.0
    %431 = vmatpush1.msra.mxu0 0.0
    %432 = vmatprep.subr.mxu0 0.0
    %433 = vmatpush1.msra.mxu0 0.0
    %434 = vmatprep.mubr.f32.mxu0 0.0
    %435 = vmatmul.mubr.f32.gmra.mrb[0].mxu0 %v368
    %v436 = vpop.f32.mrb[0].mxu0
    %v437 = vadd.f32 %v366, %v436
    %v438 = vpop.f32.mrb[0].mxu0
    %439 = vdwg.mxu0
    %v440 = vadd.f32 %v316, %v437
    %v441 = vxor.u32 %v440, 2147483648
    %v442 = vmul.f32 %v441, 1.442695
    %v443 = vpow.pop %v442
    %v444 = vadd.f32 %v443, 1.0
    %v445 = vrcp.pop %v444
    %v446 = vmul.f32 1.0, %v445
    %448 = vrot.lane.b32.xlu0 %v437, 64
    %v449 = vpop.permute.xlu0 %448
    %v451 = vmul.f32 %v446, %v449
    %453 = vrot.lane.b32.xlu0 %v451, 64
    %v454 = vpop.permute.xlu0 %453
    %v456 = vadd.f32 %v316, %v454
    %v457 = vtanh.pop %v456
    %v458 = vsub.f32 1.0, %v446
    %460 = vrot.lane.b32.xlu0 %v457, 96
    %v461 = vpop.permute.xlu0 %460
    %v463 = vmul.f32 %v458, %v461
    %464 = vrot.lane.b32.xlu0 %v81, 96
    %v465 = vpop.permute.xlu0 %464
    %v467 = vmul.f32 %v446, %v465
    %v468 = vadd.f32 %v463, %v467
    %v469 = vld [vmem:[%s2] sm:$0xff]
    %v470 = vld [vmem:[%s2 + $0x8] sm:$0xff]
    %472 = vrot.lane.b32.xlu0 %v468, 96
    %v473 = vpop.permute.xlu0 %472
    %474 = vrot.lane.b32.xlu0 %v55, 64
    %v475 = vpop.permute.xlu0 %474
    %476 = vrot.lane.b32.xlu0 %v56, 64
    %v477 = vpop.permute.xlu0 %476
    %478 = vrot.lane.b32.xlu0 %v57, 64
    %v479 = vpop.permute.xlu0 %478
    %480 = vrot.lane.b32.xlu0 %v58, 64
    %v481 = vpop.permute.xlu0 %480
    %v486 = vsel %vm245, %v473, 0
    %488 = vmatprep.subr.mxu0 0.0
    %489 = vmatpush1.msra.mxu0 %v475
    %490 = vmatprep.subr.mxu0 0.0
    %491 = vmatpush1.msra.mxu0 %v477
    %492 = vmatprep.subr.mxu0 0.0
    %493 = vmatpush1.msra.mxu0 %v479
    %494 = vmatprep.subr.mxu0 0.0
    %495 = vmatpush1.msra.mxu0 %v481
    %496 = vmatprep.subr.mxu0 0.0
    %497 = vmatpush1.msra.mxu0 0.0
    %498 = vmatprep.subr.mxu0 0.0
    %499 = vmatpush1.msra.mxu0 0.0
    %500 = vmatprep.subr.mxu0 0.0
    %501 = vmatpush1.msra.mxu0 0.0
    %502 = vmatprep.subr.mxu0 0.0
    %503 = vmatpush1.msra.mxu0 0.0
    %504 = vmatprep.subr.mxu0 0.0
    %505 = vmatpush1.msra.mxu0 0.0
    %506 = vmatprep.subr.mxu0 0.0
    %507 = vmatpush1.msra.mxu0 0.0
    %508 = vmatprep.subr.mxu0 0.0
    %509 = vmatpush1.msra.mxu0 0.0
    %510 = vmatprep.subr.mxu0 0.0
    %511 = vmatpush1.msra.mxu0 0.0
    %512 = vmatprep.subr.mxu0 0.0
    %513 = vmatpush1.msra.mxu0 0.0
    %514 = vmatprep.subr.mxu0 0.0
    %515 = vmatpush1.msra.mxu0 0.0
    %516 = vmatprep.subr.mxu0 0.0
    %517 = vmatpush1.msra.mxu0 0.0
    %518 = vmatprep.subr.mxu0 0.0
    %519 = vmatpush1.msra.mxu0 0.0
    %520 = vmatprep.subr.mxu0 0.0
    %521 = vmatpush1.msra.mxu0 0.0
    %522 = vmatprep.subr.mxu0 0.0
    %523 = vmatpush1.msra.mxu0 0.0
    %524 = vmatprep.subr.mxu0 0.0
    %525 = vmatpush1.msra.mxu0 0.0
    %526 = vmatprep.subr.mxu0 0.0
    %527 = vmatpush1.msra.mxu0 0.0
    %528 = vmatprep.subr.mxu0 0.0
    %529 = vmatpush1.msra.mxu0 0.0
    %530 = vmatprep.subr.mxu0 0.0
    %531 = vmatpush1.msra.mxu0 0.0
    %532 = vmatprep.subr.mxu0 0.0
    %533 = vmatpush1.msra.mxu0 0.0
    %534 = vmatprep.subr.mxu0 0.0
    %535 = vmatpush1.msra.mxu0 0.0
    %536 = vmatprep.subr.mxu0 0.0
    %537 = vmatpush1.msra.mxu0 0.0
    %538 = vmatprep.subr.mxu0 0.0
    %539 = vmatpush1.msra.mxu0 0.0
    %540 = vmatprep.subr.mxu0 0.0
    %541 = vmatpush1.msra.mxu0 0.0
    %542 = vmatprep.subr.mxu0 0.0
    %543 = vmatpush1.msra.mxu0 0.0
    %544 = vmatprep.subr.mxu0 0.0
    %545 = vmatpush1.msra.mxu0 0.0
    %546 = vmatprep.subr.mxu0 0.0
    %547 = vmatpush1.msra.mxu0 0.0
    %548 = vmatprep.subr.mxu0 0.0
    %549 = vmatpush1.msra.mxu0 0.0
    %550 = vmatprep.subr.mxu0 0.0
    %551 = vmatpush1.msra.mxu0 0.0
    %552 = vmatprep.mubr.f32.mxu0 0.0
    %553 = vmatmul.mubr.f32.gmra.mrb[0].mxu0 %v486
    %v554 = vpop.f32.mrb[0].mxu0
    %v555 = vadd.f32 0.0, %v554
    %v556 = vpop.f32.mrb[0].mxu0
    %557 = vdwg.mxu0
    %v560 = vunpack.c.l.s4 1966171168
    %v561 = vunpack.c.0.s8 %v560
    %v562 = vlaneseq
    %v563 = vshrl.u32 %v562, 7
    %v564 = vsub.s32 %v561, %v563
    %v565 = vrot.slane %v555, %v564
    %v566 = vcombine.high %v565, %v565
    %v568 = vunpack.c.l.s4 1966171168
    %v569 = vunpack.c.0.s8 %v568
    %v570 = vlaneseq
    %v571 = vshrl.u32 %v570, 7
    %v572 = vsub.s32 %v569, %v571
    %v573 = vrot.slane %v565, %v572
    %v575 = vunpack.c.l.s4 1966171168
    %v576 = vunpack.c.0.s8 %v575
    %v577 = vlaneseq
    %v578 = vshrl.u32 %v577, 7
    %v579 = vsub.s32 %v576, %v578
    %v580 = vrot.slane %v566, %v579
    %v581 = vsel %vm245, %v573, 0
    %v584 = vsel %vm245, %v469, 0
    %586 = vmatprep.subr.mxu0 0.0
    %587 = vmatpush1.xpose.msra.mxu0 %v584
    %588 = vmatprep.subr.mxu0 0.0
    %589 = vmatpush1.xpose.msra.mxu0 0.0
    %590 = vmatprep.subr.mxu0 0.0
    %591 = vmatpush1.xpose.msra.mxu0 0.0
    %592 = vmatprep.subr.mxu0 0.0
    %593 = vmatpush1.xpose.msra.mxu0 0.0
    %594 = vmatprep.subr.mxu0 0.0
    %595 = vmatpush1.xpose.msra.mxu0 0.0
    %596 = vmatprep.subr.mxu0 0.0
    %597 = vmatpush1.xpose.msra.mxu0 0.0
    %598 = vmatprep.subr.mxu0 0.0
    %599 = vmatpush1.xpose.msra.mxu0 0.0
    %600 = vmatprep.subr.mxu0 0.0
    %601 = vmatpush1.xpose.msra.mxu0 0.0
    %602 = vmatprep.subr.mxu0 0.0
    %603 = vmatpush1.xpose.msra.mxu0 0.0
    %604 = vmatprep.subr.mxu0 0.0
    %605 = vmatpush1.xpose.msra.mxu0 0.0
    %606 = vmatprep.subr.mxu0 0.0
    %607 = vmatpush1.xpose.msra.mxu0 0.0
    %608 = vmatprep.subr.mxu0 0.0
    %609 = vmatpush1.xpose.msra.mxu0 0.0
    %610 = vmatprep.subr.mxu0 0.0
    %611 = vmatpush1.xpose.msra.mxu0 0.0
    %612 = vmatprep.subr.mxu0 0.0
    %613 = vmatpush1.xpose.msra.mxu0 0.0
    %614 = vmatprep.subr.mxu0 0.0
    %615 = vmatpush1.xpose.msra.mxu0 0.0
    %616 = vmatprep.subr.mxu0 0.0
    %617 = vmatpush1.xpose.msra.mxu0 0.0
    %618 = vmatprep.subr.mxu0 0.0
    %619 = vmatpush1.xpose.msra.mxu0 0.0
    %620 = vmatprep.subr.mxu0 0.0
    %621 = vmatpush1.xpose.msra.mxu0 0.0
    %622 = vmatprep.subr.mxu0 0.0
    %623 = vmatpush1.xpose.msra.mxu0 0.0
    %624 = vmatprep.subr.mxu0 0.0
    %625 = vmatpush1.xpose.msra.mxu0 0.0
    %626 = vmatprep.subr.mxu0 0.0
    %627 = vmatpush1.xpose.msra.mxu0 0.0
    %628 = vmatprep.subr.mxu0 0.0
    %629 = vmatpush1.xpose.msra.mxu0 0.0
    %630 = vmatprep.subr.mxu0 0.0
    %631 = vmatpush1.xpose.msra.mxu0 0.0
    %632 = vmatprep.subr.mxu0 0.0
    %633 = vmatpush1.xpose.msra.mxu0 0.0
    %634 = vmatprep.subr.mxu0 0.0
    %635 = vmatpush1.xpose.msra.mxu0 0.0
    %636 = vmatprep.subr.mxu0 0.0
    %637 = vmatpush1.xpose.msra.mxu0 0.0
    %638 = vmatprep.subr.mxu0 0.0
    %639 = vmatpush1.xpose.msra.mxu0 0.0
    %640 = vmatprep.subr.mxu0 0.0
    %641 = vmatpush1.xpose.msra.mxu0 0.0
    %642 = vmatprep.subr.mxu0 0.0
    %643 = vmatpush1.xpose.msra.mxu0 0.0
    %644 = vmatprep.subr.mxu0 0.0
    %645 = vmatpush1.xpose.msra.mxu0 0.0
    %646 = vmatprep.subr.mxu0 0.0
    %647 = vmatpush1.xpose.msra.mxu0 0.0
    %648 = vmatprep.subr.mxu0 0.0
    %649 = vmatpush1.xpose.msra.mxu0 0.0
    %650 = vmatprep.mubr.f32.mxu0 0.0
    %651 = vmatmul.mubr.f32.gmra.mrb[0].mxu0 %v581
    %v652 = vpop.f32.mrb[0].mxu0
    %v653 = vadd.f32 0.0, %v652
    %v654 = vpop.f32.mrb[0].mxu0
    %655 = vdwg.mxu0
    %v656 = vsel %vm245, %v580, 0
    %v659 = vsel %vm245, %v470, 0
    %661 = vmatprep.subr.mxu0 0.0
    %662 = vmatpush1.xpose.msra.mxu0 %v659
    %663 = vmatprep.subr.mxu0 0.0
    %664 = vmatpush1.xpose.msra.mxu0 0.0
    %665 = vmatprep.subr.mxu0 0.0
    %666 = vmatpush1.xpose.msra.mxu0 0.0
    %667 = vmatprep.subr.mxu0 0.0
    %668 = vmatpush1.xpose.msra.mxu0 0.0
    %669 = vmatprep.subr.mxu0 0.0
    %670 = vmatpush1.xpose.msra.mxu0 0.0
    %671 = vmatprep.subr.mxu0 0.0
    %672 = vmatpush1.xpose.msra.mxu0 0.0
    %673 = vmatprep.subr.mxu0 0.0
    %674 = vmatpush1.xpose.msra.mxu0 0.0
    %675 = vmatprep.subr.mxu0 0.0
    %676 = vmatpush1.xpose.msra.mxu0 0.0
    %677 = vmatprep.subr.mxu0 0.0
    %678 = vmatpush1.xpose.msra.mxu0 0.0
    %679 = vmatprep.subr.mxu0 0.0
    %680 = vmatpush1.xpose.msra.mxu0 0.0
    %681 = vmatprep.subr.mxu0 0.0
    %682 = vmatpush1.xpose.msra.mxu0 0.0
    %683 = vmatprep.subr.mxu0 0.0
    %684 = vmatpush1.xpose.msra.mxu0 0.0
    %685 = vmatprep.subr.mxu0 0.0
    %686 = vmatpush1.xpose.msra.mxu0 0.0
    %687 = vmatprep.subr.mxu0 0.0
    %688 = vmatpush1.xpose.msra.mxu0 0.0
    %689 = vmatprep.subr.mxu0 0.0
    %690 = vmatpush1.xpose.msra.mxu0 0.0
    %691 = vmatprep.subr.mxu0 0.0
    %692 = vmatpush1.xpose.msra.mxu0 0.0
    %693 = vmatprep.subr.mxu0 0.0
    %694 = vmatpush1.xpose.msra.mxu0 0.0
    %695 = vmatprep.subr.mxu0 0.0
    %696 = vmatpush1.xpose.msra.mxu0 0.0
    %697 = vmatprep.subr.mxu0 0.0
    %698 = vmatpush1.xpose.msra.mxu0 0.0
    %699 = vmatprep.subr.mxu0 0.0
    %700 = vmatpush1.xpose.msra.mxu0 0.0
    %701 = vmatprep.subr.mxu0 0.0
    %702 = vmatpush1.xpose.msra.mxu0 0.0
    %703 = vmatprep.subr.mxu0 0.0
    %704 = vmatpush1.xpose.msra.mxu0 0.0
    %705 = vmatprep.subr.mxu0 0.0
    %706 = vmatpush1.xpose.msra.mxu0 0.0
    %707 = vmatprep.subr.mxu0 0.0
    %708 = vmatpush1.xpose.msra.mxu0 0.0
    %709 = vmatprep.subr.mxu0 0.0
    %710 = vmatpush1.xpose.msra.mxu0 0.0
    %711 = vmatprep.subr.mxu0 0.0
    %712 = vmatpush1.xpose.msra.mxu0 0.0
    %713 = vmatprep.subr.mxu0 0.0
    %714 = vmatpush1.xpose.msra.mxu0 0.0
    %715 = vmatprep.subr.mxu0 0.0
    %716 = vmatpush1.xpose.msra.mxu0 0.0
    %717 = vmatprep.subr.mxu0 0.0
    %718 = vmatpush1.xpose.msra.mxu0 0.0
    %719 = vmatprep.subr.mxu0 0.0
    %720 = vmatpush1.xpose.msra.mxu0 0.0
    %721 = vmatprep.subr.mxu0 0.0
    %722 = vmatpush1.xpose.msra.mxu0 0.0
    %723 = vmatprep.subr.mxu0 0.0
    %724 = vmatpush1.xpose.msra.mxu0 0.0
    %725 = vmatprep.mubr.f32.mxu0 0.0
    %726 = vmatmul.mubr.f32.gmra.mrb[0].mxu0 %v656
    %v727 = vpop.f32.mrb[0].mxu0
    %v728 = vadd.f32 0.0, %v727
    %v729 = vpop.f32.mrb[0].mxu0
    %730 = vdwg.mxu0
    %vm731 = vcmask 57344
    %v732 = vsel %vm731, %v653, -inf
    %733 = vmax.xlane.f32.xlu0 %v732
    %v734 = vpop.xlane.xlu0 %733
    %v735 = vsel %vm731, %v728, -inf
    %736 = vmax.xlane.f32.xlu0 %v735
    %v737 = vpop.xlane.xlu0 %736
    %v738 = vsub.f32 %v653, %v734
    %v739 = vsub.f32 %v728, %v737
    %v740 = vmul.f32 %v738, 1.442695
    %v741 = vpow.pop %v740
    %v742 = vmul.f32 %v739, 1.442695
    %v743 = vpow.pop %v742
    %v744 = vsel %vm731, %v741, 0.0
    %745 = vadd.xlane.f32.xlu0 %v744
    %v746 = vpop.xlane.xlu0 %745
    %v747 = vsel %vm731, %v743, 0.0
    %748 = vadd.xlane.f32.xlu0 %v747
    %v749 = vpop.xlane.xlu0 %748
    %v750 = vrcp.pop %v746
    %v751 = vrcp.pop %v749
    %v752 = vmul.f32 %v741, %v750
    %v753 = vmul.f32 %v743, %v751
    %vm754 = vcmask 64512
    %v756 = vsel %vm754, %v752, 0
    %758 = vmatprep.subr.mxu0 0.0
    %759 = vmatpush1.msra.mxu0 %v469
    %760 = vmatprep.subr.mxu0 0.0
    %761 = vmatpush1.msra.mxu0 0.0
    %762 = vmatprep.subr.mxu0 0.0
    %763 = vmatpush1.msra.mxu0 0.0
    %764 = vmatprep.subr.mxu0 0.0
    %765 = vmatpush1.msra.mxu0 0.0
    %766 = vmatprep.subr.mxu0 0.0
    %767 = vmatpush1.msra.mxu0 0.0
    %768 = vmatprep.subr.mxu0 0.0
    %769 = vmatpush1.msra.mxu0 0.0
    %770 = vmatprep.subr.mxu0 0.0
    %771 = vmatpush1.msra.mxu0 0.0
    %772 = vmatprep.subr.mxu0 0.0
    %773 = vmatpush1.msra.mxu0 0.0
    %774 = vmatprep.subr.mxu0 0.0
    %775 = vmatpush1.msra.mxu0 0.0
    %776 = vmatprep.subr.mxu0 0.0
    %777 = vmatpush1.msra.mxu0 0.0
    %778 = vmatprep.subr.mxu0 0.0
    %779 = vmatpush1.msra.mxu0 0.0
    %780 = vmatprep.subr.mxu0 0.0
    %781 = vmatpush1.msra.mxu0 0.0
    %782 = vmatprep.subr.mxu0 0.0
    %783 = vmatpush1.msra.mxu0 0.0
    %784 = vmatprep.subr.mxu0 0.0
    %785 = vmatpush1.msra.mxu0 0.0
    %786 = vmatprep.subr.mxu0 0.0
    %787 = vmatpush1.msra.mxu0 0.0
    %788 = vmatprep.subr.mxu0 0.0
    %789 = vmatpush1.msra.mxu0 0.0
    %790 = vmatprep.subr.mxu0 0.0
    %791 = vmatpush1.msra.mxu0 0.0
    %792 = vmatprep.subr.mxu0 0.0
    %793 = vmatpush1.msra.mxu0 0.0
    %794 = vmatprep.subr.mxu0 0.0
    %795 = vmatpush1.msra.mxu0 0.0
    %796 = vmatprep.subr.mxu0 0.0
    %797 = vmatpush1.msra.mxu0 0.0
    %798 = vmatprep.subr.mxu0 0.0
    %799 = vmatpush1.msra.mxu0 0.0
    %800 = vmatprep.subr.mxu0 0.0
    %801 = vmatpush1.msra.mxu0 0.0
    %802 = vmatprep.subr.mxu0 0.0
    %803 = vmatpush1.msra.mxu0 0.0
    %804 = vmatprep.subr.mxu0 0.0
    %805 = vmatpush1.msra.mxu0 0.0
    %806 = vmatprep.subr.mxu0 0.0
    %807 = vmatpush1.msra.mxu0 0.0
    %808 = vmatprep.subr.mxu0 0.0
    %809 = vmatpush1.msra.mxu0 0.0
    %810 = vmatprep.subr.mxu0 0.0
    %811 = vmatpush1.msra.mxu0 0.0
    %812 = vmatprep.subr.mxu0 0.0
    %813 = vmatpush1.msra.mxu0 0.0
    %814 = vmatprep.subr.mxu0 0.0
    %815 = vmatpush1.msra.mxu0 0.0
    %816 = vmatprep.subr.mxu0 0.0
    %817 = vmatpush1.msra.mxu0 0.0
    %818 = vmatprep.subr.mxu0 0.0
    %819 = vmatpush1.msra.mxu0 0.0
    %820 = vmatprep.subr.mxu0 0.0
    %821 = vmatpush1.msra.mxu0 0.0
    %822 = vmatprep.mubr.f32.mxu0 0.0
    %823 = vmatmul.mubr.f32.gmra.mrb[0].mxu0 %v756
    %v824 = vpop.f32.mrb[0].mxu0
    %v825 = vadd.f32 0.0, %v824
    %v826 = vpop.f32.mrb[0].mxu0
    %827 = vdwg.mxu0
    %v829 = vsel %vm754, %v753, 0
    %831 = vmatprep.subr.mxu0 0.0
    %832 = vmatpush1.msra.mxu0 %v470
    %833 = vmatprep.subr.mxu0 0.0
    %834 = vmatpush1.msra.mxu0 0.0
    %835 = vmatprep.subr.mxu0 0.0
    %836 = vmatpush1.msra.mxu0 0.0
    %837 = vmatprep.subr.mxu0 0.0
    %838 = vmatpush1.msra.mxu0 0.0
    %839 = vmatprep.subr.mxu0 0.0
    %840 = vmatpush1.msra.mxu0 0.0
    %841 = vmatprep.subr.mxu0 0.0
    %842 = vmatpush1.msra.mxu0 0.0
    %843 = vmatprep.subr.mxu0 0.0
    %844 = vmatpush1.msra.mxu0 0.0
    %845 = vmatprep.subr.mxu0 0.0
    %846 = vmatpush1.msra.mxu0 0.0
    %847 = vmatprep.subr.mxu0 0.0
    %848 = vmatpush1.msra.mxu0 0.0
    %849 = vmatprep.subr.mxu0 0.0
    %850 = vmatpush1.msra.mxu0 0.0
    %851 = vmatprep.subr.mxu0 0.0
    %852 = vmatpush1.msra.mxu0 0.0
    %853 = vmatprep.subr.mxu0 0.0
    %854 = vmatpush1.msra.mxu0 0.0
    %855 = vmatprep.subr.mxu0 0.0
    %856 = vmatpush1.msra.mxu0 0.0
    %857 = vmatprep.subr.mxu0 0.0
    %858 = vmatpush1.msra.mxu0 0.0
    %859 = vmatprep.subr.mxu0 0.0
    %860 = vmatpush1.msra.mxu0 0.0
    %861 = vmatprep.subr.mxu0 0.0
    %862 = vmatpush1.msra.mxu0 0.0
    %863 = vmatprep.subr.mxu0 0.0
    %864 = vmatpush1.msra.mxu0 0.0
    %865 = vmatprep.subr.mxu0 0.0
    %866 = vmatpush1.msra.mxu0 0.0
    %867 = vmatprep.subr.mxu0 0.0
    %868 = vmatpush1.msra.mxu0 0.0
    %869 = vmatprep.subr.mxu0 0.0
    %870 = vmatpush1.msra.mxu0 0.0
    %871 = vmatprep.subr.mxu0 0.0
    %872 = vmatpush1.msra.mxu0 0.0
    %873 = vmatprep.subr.mxu0 0.0
    %874 = vmatpush1.msra.mxu0 0.0
    %875 = vmatprep.subr.mxu0 0.0
    %876 = vmatpush1.msra.mxu0 0.0
    %877 = vmatprep.subr.mxu0 0.0
    %878 = vmatpush1.msra.mxu0 0.0
    %879 = vmatprep.subr.mxu0 0.0
    %880 = vmatpush1.msra.mxu0 0.0
    %881 = vmatprep.subr.mxu0 0.0
    %882 = vmatpush1.msra.mxu0 0.0
    %883 = vmatprep.subr.mxu0 0.0
    %884 = vmatpush1.msra.mxu0 0.0
    %885 = vmatprep.subr.mxu0 0.0
    %886 = vmatpush1.msra.mxu0 0.0
    %887 = vmatprep.subr.mxu0 0.0
    %888 = vmatpush1.msra.mxu0 0.0
    %889 = vmatprep.subr.mxu0 0.0
    %890 = vmatpush1.msra.mxu0 0.0
    %891 = vmatprep.subr.mxu0 0.0
    %892 = vmatpush1.msra.mxu0 0.0
    %893 = vmatprep.subr.mxu0 0.0
    %894 = vmatpush1.msra.mxu0 0.0
    %895 = vmatprep.mubr.f32.mxu0 0.0
    %896 = vmatmul.mubr.f32.gmra.mrb[0].mxu0 %v829
    %v897 = vpop.f32.mrb[0].mxu0
    %v898 = vadd.f32 0.0, %v897
    %v899 = vpop.f32.mrb[0].mxu0
    %900 = vdwg.mxu0
    %901 = vmatprep.subr.mxu0 0.0
    %902 = vmatpush1.msra.mxu0 %v59
    %903 = vmatprep.subr.mxu0 0.0
    %904 = vmatpush1.msra.mxu0 %v60
    %905 = vmatprep.subr.mxu0 0.0
    %906 = vmatpush1.msra.mxu0 %v61
    %907 = vmatprep.subr.mxu0 0.0
    %908 = vmatpush1.msra.mxu0 %v62
    %909 = vmatprep.subr.mxu0 0.0
    %910 = vmatpush1.msra.mxu0 0.0
    %911 = vmatprep.subr.mxu0 0.0
    %912 = vmatpush1.msra.mxu0 0.0
    %913 = vmatprep.subr.mxu0 0.0
    %914 = vmatpush1.msra.mxu0 0.0
    %915 = vmatprep.subr.mxu0 0.0
    %916 = vmatpush1.msra.mxu0 0.0
    %917 = vmatprep.subr.mxu0 0.0
    %918 = vmatpush1.msra.mxu0 0.0
    %919 = vmatprep.subr.mxu0 0.0
    %920 = vmatpush1.msra.mxu0 0.0
    %921 = vmatprep.subr.mxu0 0.0
    %922 = vmatpush1.msra.mxu0 0.0
    %923 = vmatprep.subr.mxu0 0.0
    %924 = vmatpush1.msra.mxu0 0.0
    %925 = vmatprep.subr.mxu0 0.0
    %926 = vmatpush1.msra.mxu0 0.0
    %927 = vmatprep.subr.mxu0 0.0
    %928 = vmatpush1.msra.mxu0 0.0
    %929 = vmatprep.subr.mxu0 0.0
    %930 = vmatpush1.msra.mxu0 0.0
    %931 = vmatprep.subr.mxu0 0.0
    %932 = vmatpush1.msra.mxu0 0.0
    %933 = vmatprep.subr.mxu0 0.0
    %934 = vmatpush1.msra.mxu0 0.0
    %935 = vmatprep.subr.mxu0 0.0
    %936 = vmatpush1.msra.mxu0 0.0
    %937 = vmatprep.subr.mxu0 0.0
    %938 = vmatpush1.msra.mxu0 0.0
    %939 = vmatprep.subr.mxu0 0.0
    %940 = vmatpush1.msra.mxu0 0.0
    %941 = vmatprep.subr.mxu0 0.0
    %942 = vmatpush1.msra.mxu0 0.0
    %943 = vmatprep.subr.mxu0 0.0
    %944 = vmatpush1.msra.mxu0 0.0
    %945 = vmatprep.subr.mxu0 0.0
    %946 = vmatpush1.msra.mxu0 0.0
    %947 = vmatprep.subr.mxu0 0.0
    %948 = vmatpush1.msra.mxu0 0.0
    %949 = vmatprep.subr.mxu0 0.0
    %950 = vmatpush1.msra.mxu0 0.0
    %951 = vmatprep.subr.mxu0 0.0
    %952 = vmatpush1.msra.mxu0 0.0
    %953 = vmatprep.subr.mxu0 0.0
    %954 = vmatpush1.msra.mxu0 0.0
    %955 = vmatprep.subr.mxu0 0.0
    %956 = vmatpush1.msra.mxu0 0.0
    %957 = vmatprep.subr.mxu0 0.0
    %958 = vmatpush1.msra.mxu0 0.0
    %959 = vmatprep.subr.mxu0 0.0
    %960 = vmatpush1.msra.mxu0 0.0
    %961 = vmatprep.subr.mxu0 0.0
    %962 = vmatpush1.msra.mxu0 0.0
    %963 = vmatprep.subr.mxu0 0.0
    %964 = vmatpush1.msra.mxu0 0.0
    %965 = vmatprep.mubr.f32.mxu0 0.0
    %966 = vmatmul.mubr.f32.gmra.mrb[0].mxu0 %v486
    %v967 = vpop.f32.mrb[0].mxu0
    %v968 = vadd.f32 0.0, %v967
    %v969 = vpop.f32.mrb[0].mxu0
    %970 = vdwg.mxu0
    %v973 = vrot.slane %v898, 7
    %vm974 = vcmask 1041409
    %v975 = vsel %vm974, %v973, %v825
    %v980 = vsel %vm245, %v975, 0
    %982 = vmatprep.subr.mxu0 0.0
    %983 = vmatpush1.msra.mxu0 %v341
    %984 = vmatprep.subr.mxu0 0.0
    %985 = vmatpush1.msra.mxu0 %v345
    %986 = vmatprep.subr.mxu0 0.0
    %987 = vmatpush1.msra.mxu0 %v349
    %988 = vmatprep.subr.mxu0 0.0
    %989 = vmatpush1.msra.mxu0 %v353
    %990 = vmatprep.subr.mxu0 0.0
    %991 = vmatpush1.msra.mxu0 0.0
    %992 = vmatprep.subr.mxu0 0.0
    %993 = vmatpush1.msra.mxu0 0.0
    %994 = vmatprep.subr.mxu0 0.0
    %995 = vmatpush1.msra.mxu0 0.0
    %996 = vmatprep.subr.mxu0 0.0
    %997 = vmatpush1.msra.mxu0 0.0
    %998 = vmatprep.subr.mxu0 0.0
    %999 = vmatpush1.msra.mxu0 0.0
    %1000 = vmatprep.subr.mxu0 0.0
    %1001 = vmatpush1.msra.mxu0 0.0
    %1002 = vmatprep.subr.mxu0 0.0
    %1003 = vmatpush1.msra.mxu0 0.0
    %1004 = vmatprep.subr.mxu0 0.0
    %1005 = vmatpush1.msra.mxu0 0.0
    %1006 = vmatprep.subr.mxu0 0.0
    %1007 = vmatpush1.msra.mxu0 0.0
    %1008 = vmatprep.subr.mxu0 0.0
    %1009 = vmatpush1.msra.mxu0 0.0
    %1010 = vmatprep.subr.mxu0 0.0
    %1011 = vmatpush1.msra.mxu0 0.0
    %1012 = vmatprep.subr.mxu0 0.0
    %1013 = vmatpush1.msra.mxu0 0.0
    %1014 = vmatprep.subr.mxu0 0.0
    %1015 = vmatpush1.msra.mxu0 0.0
    %1016 = vmatprep.subr.mxu0 0.0
    %1017 = vmatpush1.msra.mxu0 0.0
    %1018 = vmatprep.subr.mxu0 0.0
    %1019 = vmatpush1.msra.mxu0 0.0
    %1020 = vmatprep.subr.mxu0 0.0
    %1021 = vmatpush1.msra.mxu0 0.0
    %1022 = vmatprep.subr.mxu0 0.0
    %1023 = vmatpush1.msra.mxu0 0.0
    %1024 = vmatprep.subr.mxu0 0.0
    %1025 = vmatpush1.msra.mxu0 0.0
    %1026 = vmatprep.subr.mxu0 0.0
    %1027 = vmatpush1.msra.mxu0 0.0
    %1028 = vmatprep.subr.mxu0 0.0
    %1029 = vmatpush1.msra.mxu0 0.0
    %1030 = vmatprep.subr.mxu0 0.0
    %1031 = vmatpush1.msra.mxu0 0.0
    %1032 = vmatprep.subr.mxu0 0.0
    %1033 = vmatpush1.msra.mxu0 0.0
    %1034 = vmatprep.subr.mxu0 0.0
    %1035 = vmatpush1.msra.mxu0 0.0
    %1036 = vmatprep.subr.mxu0 0.0
    %1037 = vmatpush1.msra.mxu0 0.0
    %1038 = vmatprep.subr.mxu0 0.0
    %1039 = vmatpush1.msra.mxu0 0.0
    %1040 = vmatprep.subr.mxu0 0.0
    %1041 = vmatpush1.msra.mxu0 0.0
    %1042 = vmatprep.subr.mxu0 0.0
    %1043 = vmatpush1.msra.mxu0 0.0
    %1044 = vmatprep.subr.mxu0 0.0
    %1045 = vmatpush1.msra.mxu0 0.0
    %1046 = vmatprep.mubr.f32.mxu0 0.0
    %1047 = vmatmul.mubr.f32.gmra.mrb[0].mxu0 %v980
    %v1048 = vpop.f32.mrb[0].mxu0
    %v1049 = vadd.f32 %v968, %v1048
    %v1050 = vpop.f32.mrb[0].mxu0
    %1051 = vdwg.mxu0
    %1052 = vrot.lane.b32.xlu0 %v86, 64
    %v1053 = vpop.permute.xlu0 %1052
    %v1055 = vadd.f32 %v1049, %v1053
    %v1057 = vlaneseq
    %v1058 = vshrl.u32 %v1057, 7
    %v1059 = vsub.s32 0, %v1058
    %v1060 = vrot.slane %v66, %v1059
    %1066 = vrot.lane.b32.xlu0 %v59, 96
    %v1067 = vpop.permute.xlu0 %1066
    %1068 = vrot.lane.b32.xlu0 %v60, 96
    %v1069 = vpop.permute.xlu0 %1068
    %1070 = vrot.lane.b32.xlu0 %v61, 96
    %v1071 = vpop.permute.xlu0 %1070
    %1072 = vrot.lane.b32.xlu0 %v62, 96
    %v1073 = vpop.permute.xlu0 %1072
    %v1079 = vsel %vm245, %v1055, 0
    %1081 = vmatprep.subr.mxu0 0.0
    %1082 = vmatpush1.msra.mxu0 %v1067
    %1083 = vmatprep.subr.mxu0 0.0
    %1084 = vmatpush1.msra.mxu0 %v1069
    %1085 = vmatprep.subr.mxu0 0.0
    %1086 = vmatpush1.msra.mxu0 %v1071
    %1087 = vmatprep.subr.mxu0 0.0
    %1088 = vmatpush1.msra.mxu0 %v1073
    %1089 = vmatprep.subr.mxu0 0.0
    %1090 = vmatpush1.msra.mxu0 0.0
    %1091 = vmatprep.subr.mxu0 0.0
    %1092 = vmatpush1.msra.mxu0 0.0
    %1093 = vmatprep.subr.mxu0 0.0
    %1094 = vmatpush1.msra.mxu0 0.0
    %1095 = vmatprep.subr.mxu0 0.0
    %1096 = vmatpush1.msra.mxu0 0.0
    %1097 = vmatprep.subr.mxu0 0.0
    %1098 = vmatpush1.msra.mxu0 0.0
    %1099 = vmatprep.subr.mxu0 0.0
    %1100 = vmatpush1.msra.mxu0 0.0
    %1101 = vmatprep.subr.mxu0 0.0
    %1102 = vmatpush1.msra.mxu0 0.0
    %1103 = vmatprep.subr.mxu0 0.0
    %1104 = vmatpush1.msra.mxu0 0.0
    %1105 = vmatprep.subr.mxu0 0.0
    %1106 = vmatpush1.msra.mxu0 0.0
    %1107 = vmatprep.subr.mxu0 0.0
    %1108 = vmatpush1.msra.mxu0 0.0
    %1109 = vmatprep.subr.mxu0 0.0
    %1110 = vmatpush1.msra.mxu0 0.0
    %1111 = vmatprep.subr.mxu0 0.0
    %1112 = vmatpush1.msra.mxu0 0.0
    %1113 = vmatprep.subr.mxu0 0.0
    %1114 = vmatpush1.msra.mxu0 0.0
    %1115 = vmatprep.subr.mxu0 0.0
    %1116 = vmatpush1.msra.mxu0 0.0
    %1117 = vmatprep.subr.mxu0 0.0
    %1118 = vmatpush1.msra.mxu0 0.0
    %1119 = vmatprep.subr.mxu0 0.0
    %1120 = vmatpush1.msra.mxu0 0.0
    %1121 = vmatprep.subr.mxu0 0.0
    %1122 = vmatpush1.msra.mxu0 0.0
    %1123 = vmatprep.subr.mxu0 0.0
    %1124 = vmatpush1.msra.mxu0 0.0
    %1125 = vmatprep.subr.mxu0 0.0
    %1126 = vmatpush1.msra.mxu0 0.0
    %1127 = vmatprep.subr.mxu0 0.0
    %1128 = vmatpush1.msra.mxu0 0.0
    %1129 = vmatprep.subr.mxu0 0.0
    %1130 = vmatpush1.msra.mxu0 0.0
    %1131 = vmatprep.subr.mxu0 0.0
    %1132 = vmatpush1.msra.mxu0 0.0
    %1133 = vmatprep.subr.mxu0 0.0
    %1134 = vmatpush1.msra.mxu0 0.0
    %1135 = vmatprep.subr.mxu0 0.0
    %1136 = vmatpush1.msra.mxu0 0.0
    %1137 = vmatprep.subr.mxu0 0.0
    %1138 = vmatpush1.msra.mxu0 0.0
    %1139 = vmatprep.subr.mxu0 0.0
    %1140 = vmatpush1.msra.mxu0 0.0
    %1141 = vmatprep.subr.mxu0 0.0
    %1142 = vmatpush1.msra.mxu0 0.0
    %1143 = vmatprep.subr.mxu0 0.0
    %1144 = vmatpush1.msra.mxu0 0.0
    %1145 = vmatprep.mubr.f32.mxu0 0.0
    %1146 = vmatmul.mubr.f32.gmra.mrb[0].mxu0 %v1079
    %v1147 = vpop.f32.mrb[0].mxu0
    %v1148 = vadd.f32 %v1060, %v1147
    %v1149 = vpop.f32.mrb[0].mxu0
    %1150 = vdwg.mxu0
    %vm1151 = vcmask 402432
    %v1152 = vsel %vm1151, %v1148, -inf
    %1153 = vmax.xlane.f32.xlu0 %v1152
    %v1154 = vpop.xlane.xlu0 %1153
    %v1155 = vsub.f32 %v1148, %v1154
    %v1156 = vmul.f32 %v1155, 1.442695
    %v1157 = vpow.pop %v1156
    %v1158 = vsel %vm1151, %v1157, 0.0
    %1159 = vadd.xlane.f32.xlu0 %v1158
    %v1160 = vpop.xlane.xlu0 %1159
    %v1161 = vlog2.pop %v1160
    %v1162 = vmul.f32 %v1161, 0.6931472
    %v1163 = vsub.f32 %v1155, %v1162
    %1164 = vrot.lane.b32.xlu0 %v468, 18
    %v1165 = vpop.permute.xlu0 %1164
    %v1167 = vrot.slane %v753, 7
    %v1168 = vsel %vm974, %v1167, %v752
    %1169 = vrot.lane.b32.xlu0 %v1168, 82
    %v1170 = vpop.permute.xlu0 %1169
    %vm1172 = vcmask 408576
    %v1173 = vsel %vm1172, %v1163, %v1165
    %vm1174 = vcmask 670720
    %v1175 = vsel %vm1174, %v1173, %v1170
    %vm1176 = vcmask 736256
    %v1177 = vsel %vm1176, %v1175, 0.0
    %1178 = vst [vmem:[%s6] sm:$0x3] %v1177
    // Predicated region
    $region30: #{globally_attentive_decoder.1} parent=1 // pred_check
      _
    $region31: #{globally_attentive_decoder.1} parent=1 // pred_check_branch
      %1180 = sbr.rel (0) target = $region33
    $region32: #{globally_attentive_decoder.1} parent=1 // pred_region
      _
    $region33: #{globally_attentive_decoder.1} parent=1 // pred_fallthru
      _
    // Predicated region
    $region34: #{globally_attentive_decoder.1} parent=1 // pred_check
      _
    $region35: #{globally_attentive_decoder.1} parent=1 // pred_check_branch
      %1182 = sbr.rel (0) target = $region37
    $region36: #{globally_attentive_decoder.1} parent=1 // pred_region
      _
    $region37: #{globally_attentive_decoder.1} parent=1 // pred_fallthru
      _
    %1183 = vsyncpa [#allocation3], 1

</llo_original>
